<compile_context>
chip_gen: v6e
topology: v6e:2x2x1
jax: 0.10.0
libtpu: 0.0.40
codegen_flags: <defaults>
</compile_context>

<pallas_src>
import functools

import jax
import jax.numpy as jnp
from jax.experimental import pallas as pl
from jax.experimental.pallas import tpu as pltpu


def _round_up(a, b):
    return (a + b - 1) // b * b


def dylr_kernel(x_ref, w_in_ref, w_out_ref, o_ref):
    # x_ref:     (TM, inp)
    # w_in_ref:  (inp, 2*rank^2)  == [fc.weight.T | tiled cls_q.weight.T]
    # w_out_ref: (rank^2, oup_pad) == row-repeated cls_p.weight.T, zero-padded lanes
    # o_ref:     (TM, oup_pad)
    r2 = w_out_ref.shape[0]

    # One fused MXU matmul: columns [:r2] are phi (row-major (r, j)),
    # columns [r2:] are q broadcast so that column r*rank+j holds q[:, j].
    h = jnp.dot(x_ref[...], w_in_ref[...], preferred_element_type=jnp.float32)

    # prod[m, r*rank+j] = dy_phi[m, r, j] * q[m, j]   (pure VPU, static lane slices)
    prod = (h[:, :r2] * h[:, r2:]).astype(w_out_ref.dtype)

    # out[m, o] = sum_{r,j} dy_phi[m,r,j] * q[m,j] * Wp[o,r]  (seg-sum folded into W_out)
    out = jnp.dot(prod, w_out_ref[...], preferred_element_type=jnp.float32)
    o_ref[...] = out.astype(o_ref.dtype)


@functools.partial(jax.jit, static_argnames=("rank", "tile_m", "out_dtype"))
def dylr_forward(x, w_fc, w_q, w_p, *, rank, tile_m=512, out_dtype=None):
    """x: (B, S, inp); w_fc: (rank^2, inp); w_q: (rank, inp); w_p: (oup, rank)."""
    B, S, inp = x.shape
    oup = w_p.shape[0]
    r2 = rank * rank
    dtype = x.dtype
    if out_dtype is None:
        out_dtype = x.dtype

    M = B * S
    # Big row tiles; shrink for tiny problems, pad M instead of asserting.
    eff_tile = min(tile_m, _round_up(M, 8))
    M_pad = _round_up(M, eff_tile)

    x2d = x.reshape(M, inp)
    if M_pad != M:
        x2d = jnp.pad(x2d, ((0, M_pad - M), (0, 0)))

    # --- one-time host-side weight prep (all folded algebra) -----------------
    wfc_t = w_fc.T.astype(dtype)                         # (inp, r2), col r*rank+j = fc[r*rank+j]
    wq_tiled = jnp.tile(w_q.T.astype(dtype), (1, rank))  # (inp, r2), col r*rank+j = cls_q[j]
    w_in = jnp.concatenate([wfc_t, wq_tiled], axis=1)    # (inp, 2*r2)

    # W_out[k, o] = cls_p.weight.T[k // rank, o]  (== segment-sum @ cls_p.weight.T)
    w_out = jnp.repeat(w_p.T.astype(dtype), rank, axis=0)  # (r2, oup)
    oup_pad = _round_up(oup, 128)                           # lane-dense output slab
    if oup_pad != oup:
        w_out = jnp.pad(w_out, ((0, 0), (0, oup_pad - oup)))

    # --- VMEM budget / compiler params ---------------------------------------
    in_item = jnp.dtype(dtype).itemsize
    out_item = jnp.dtype(out_dtype).itemsize
    vmem_bytes = (
        2 * eff_tile * inp * in_item            # double-buffered x tiles
        + 2 * eff_tile * oup_pad * out_item     # double-buffered output tiles
        + 2 * (inp * 2 * r2 + r2 * oup_pad) * in_item  # weights (worst-case 2 bufs)
    )
    vmem_limit = int(min(max(2 * vmem_bytes, 32 * 2**20), 64 * 2**20))

    grid = (M_pad // eff_tile,)

    out2d = pl.pallas_call(
        dylr_kernel,
        out_shape=jax.ShapeDtypeStruct((M_pad, oup_pad), out_dtype),
        grid_spec=pltpu.PrefetchScalarGridSpec(
            num_scalar_prefetch=0,
            grid=grid,
            in_specs=[
                pl.BlockSpec((eff_tile, inp), lambda i: (i, 0)),
                pl.BlockSpec((inp, 2 * r2), lambda i: (0, 0)),
                pl.BlockSpec((r2, oup_pad), lambda i: (0, 0)),
            ],
            out_specs=pl.BlockSpec((eff_tile, oup_pad), lambda i: (i, 0)),
        ),
        compiler_params=pltpu.CompilerParams(
            dimension_semantics=("parallel",),
            vmem_limit_bytes=vmem_limit,
        ),
    )(x2d, w_in, w_out)

    return out2d[:M, :oup].reshape(B, S, oup)


def dylr_reference(x, w_fc, w_q, w_p, rank):
    """Pure-JAX reference mirroring the PyTorch forward."""
    B, S, _ = x.shape
    dy_phi = (x @ w_fc.T).reshape(B, S, rank, rank)
    q = x @ w_q.T                                            # (B, S, rank)
    y = jnp.einsum("bsrj,bsj->bsr", dy_phi, q)               # (B, S, rank)
    return y @ w_p.T                                         # (B, S, oup)


if __name__ == "__main__":
    # Small shapes consistent with the module: batch=2, seq=8, inp=32, oup=8, rank=4
    B, S, INP, OUP, RANK = 2, 8, 32, 8, 4

    key = jax.random.PRNGKey(0)
    kx, kfc, kq, kp = jax.random.split(key, 4)

    x = jax.random.normal(kx, (B, S, INP), dtype=jnp.float32)
    # Deterministic synthetic parameters (PyTorch Linear weight shapes: (out, in))
    w_fc = 0.02 * jax.random.normal(kfc, (RANK * RANK, INP), dtype=jnp.float32)
    w_q = 0.02 * jax.random.normal(kq, (RANK, INP), dtype=jnp.float32)
    w_p = 0.02 * jax.random.normal(kp, (OUP, RANK), dtype=jnp.float32)

    # TODO(synk): scale_weight=True branch references undefined names (nx, nf)
    # in the PyTorch source, so only the scale_weight=False path is implemented.

    out = dylr_forward(x, w_fc, w_q, w_p, rank=RANK)
    out = jax.block_until_ready(out)

    ref = dylr_reference(x, w_fc, w_q, w_p, RANK)
    assert out.shape == (B, S, OUP), out.shape
    assert jnp.allclose(out, ref, atol=1e-5, rtol=1e-5), (
        float(jnp.max(jnp.abs(out - ref))))

    print("KERNEL_OK")
</pallas_src>

<mosaic_0001>
module attributes {stable_mosaic.version = 11 : i64} {
  func.func @dylr_kernel(%arg0: i32, %arg1: memref<16x32xf32, #tpu.memory_space<vmem>>, %arg2: memref<32x32xf32, #tpu.memory_space<vmem>>, %arg3: memref<16x128xf32, #tpu.memory_space<vmem>>, %arg4: memref<16x128xf32, #tpu.memory_space<vmem>>) attributes {dimension_semantics = [#tpu.dimension_semantics<parallel>], iteration_bounds = array<i64: 1>, scalar_prefetch = 0 : i64, scratch_operands = 0 : i64, tpu.core_type = #tpu.core_type<tc>, window_params = [{transform_indices = @transform_0, window_bounds = array<i64: 16, 32>}, {pipeline_mode = #tpu.pipeline_mode<synchronous>, transform_indices = @transform_1, window_bounds = array<i64: 32, 32>}, {pipeline_mode = #tpu.pipeline_mode<synchronous>, transform_indices = @transform_2, window_bounds = array<i64: 16, 128>}, {transform_indices = @transform_3, window_bounds = array<i64: 16, 128>}]} {
    %c0 = arith.constant 0 : index
    %c0_0 = arith.constant 0 : index
    %0 = vector.load %arg1[%c0, %c0_0] : memref<16x32xf32, #tpu.memory_space<vmem>>, vector<16x32xf32>
    %c0_1 = arith.constant 0 : index
    %c0_2 = arith.constant 0 : index
    %1 = vector.load %arg2[%c0_1, %c0_2] : memref<32x32xf32, #tpu.memory_space<vmem>>, vector<32x32xf32>
    %cst = arith.constant dense<0.000000e+00> : vector<16x32xf32>
    %2 = tpu.matmul %0, %1, %cst {dimension_numbers = #tpu.dot_dimension_numbers<[1], [0], [0], [1], [0, 0, 1, 1], [], []>} : vector<16x32xf32>, vector<32x32xf32>, vector<16x32xf32> -> vector<16x32xf32>
    %3 = vector.extract_strided_slice %2 {offsets = [0, 0], sizes = [16, 16], strides = [1, 1]} : vector<16x32xf32> to vector<16x16xf32>
    %4 = vector.extract_strided_slice %2 {offsets = [0, 16], sizes = [16, 16], strides = [1, 1]} : vector<16x32xf32> to vector<16x16xf32>
    %5 = arith.mulf %3, %4 : vector<16x16xf32>
    %c0_3 = arith.constant 0 : index
    %c0_4 = arith.constant 0 : index
    %6 = vector.load %arg3[%c0_3, %c0_4] : memref<16x128xf32, #tpu.memory_space<vmem>>, vector<16x128xf32>
    %cst_5 = arith.constant dense<0.000000e+00> : vector<16x128xf32>
    %7 = tpu.matmul %5, %6, %cst_5 {dimension_numbers = #tpu.dot_dimension_numbers<[1], [0], [0], [1], [0, 0, 1, 1], [], []>} : vector<16x16xf32>, vector<16x128xf32>, vector<16x128xf32> -> vector<16x128xf32>
    %c0_6 = arith.constant 0 : index
    %c0_7 = arith.constant 0 : index
    %8 = vector.load %arg4[%c0_6, %c0_7] : memref<16x128xf32, #tpu.memory_space<vmem>>, vector<16x128xf32>
    tpu.vector_store %arg4[%c0_6, %c0_7], %7 {strides = array<i32>} : memref<16x128xf32, #tpu.memory_space<vmem>>, vector<16x128xf32>,
    return
  }
  func.func @transform_0(%arg0: i32) -> (i32, i32) {
    %c0_i32 = arith.constant 0 : i32
    %c0_i32_0 = arith.constant 0 : i32
    return %arg0, %c0_i32 : i32, i32
  }
  func.func @transform_1(%arg0: i32) -> (i32, i32) {
    %c0_i32 = arith.constant 0 : i32
    %c0_i32_0 = arith.constant 0 : i32
    %c0_i32_1 = arith.constant 0 : i32
    return %c0_i32, %c0_i32_0 : i32, i32
  }
  func.func @transform_2(%arg0: i32) -> (i32, i32) {
    %c0_i32 = arith.constant 0 : i32
    %c0_i32_0 = arith.constant 0 : i32
    %c0_i32_1 = arith.constant 0 : i32
    return %c0_i32, %c0_i32_0 : i32, i32
  }
  func.func @transform_3(%arg0: i32) -> (i32, i32) {
    %c0_i32 = arith.constant 0 : i32
    %c0_i32_0 = arith.constant 0 : i32
    return %arg0, %c0_i32 : i32, i32
  }
}

</mosaic_0001>

<llo_original>
// kernel: dylr_forward.1
$region0: #{dylr_forward.1}
  #allocation0 [shape = 'u32[]', space=smem, size = 0x4, offset = 0x4, fixed_abs, tag = 'smem constant byte address 0x4 - core index']
  #allocation1 [shape = 'u32[144,128]{1,0:T(1,128)}', space=vmem, size = 0x12000, scoped, tag = 'internal scratch']
  %s0 = inlined_call_operand.vmem [shape: f32[16,32], index: 0, kind: input, shape index: {}]
  %s1 = inlined_call_operand.vmem [shape: f32[32,32], index: 1, kind: input, shape index: {}]
  %s2 = inlined_call_operand.vmem [shape: f32[16,128], index: 2, kind: input, shape index: {}]
  %s3 = inlined_call_operand.vmem [shape: f32[16,128], index: 3, kind: output, shape index: {}]
  %s4 = sld [smem:[#allocation0]]
  $region22: #{dylr_forward.1} parent=0
    _
  %s6 = ssub.s32 1, %s4
  %s7 = scalar_select 0, %s6, %s4
  // Predicated region
  $region2: #{dylr_forward.1} parent=0 // pred_check
    _
  $region3: #{dylr_forward.1} parent=0 // pred_check_branch
    %9 = sbr.rel (0) target = $region5
  $region4: #{dylr_forward.1} parent=0 // pred_region
    _
  $region5: #{dylr_forward.1} parent=0 // pred_fallthru
    _
  // Predicated region
  $region6: #{dylr_forward.1} parent=0 // pred_check
    _
  $region7: #{dylr_forward.1} parent=0 // pred_check_branch
    %11 = sbr.rel (0) target = $region9
  $region8: #{dylr_forward.1} parent=0 // pred_region
    _
  $region9: #{dylr_forward.1} parent=0 // pred_fallthru
    _
  // Predicated region
  $region10: #{dylr_forward.1} parent=0 // pred_check
    _
  $region11: #{dylr_forward.1} parent=0 // pred_check_branch
    %13 = sbr.rel (0) target = $region13
  $region12: #{dylr_forward.1} parent=0 // pred_region
    _
  $region13: #{dylr_forward.1} parent=0 // pred_fallthru
    _
  %v14 = vld [vmem:[%s0] sm:$0xff]
  %v15 = vld [vmem:[%s0 + $0x8] sm:$0xff]
  %v16 = vld [vmem:[%s1] sm:$0xff]
  %v17 = vld [vmem:[%s1 + $0x8] sm:$0xff]
  %v18 = vld [vmem:[%s1 + $0x10] sm:$0xff]
  %v19 = vld [vmem:[%s1 + $0x18] sm:$0xff]
  %vm20 = vcmask 261120
  %v22 = vsel %vm20, %v14, 0
  %v25 = vsel %vm20, %v15, 0
  %27 = vmatprep.subr.mxu0 0.0
  %28 = vmatpush1.msra.mxu0 0.0
  %29 = vmatprep.subr.mxu0 0.0
  %30 = vmatpush1.msra.mxu0 0.0
  %31 = vmatprep.subr.mxu0 0.0
  %32 = vmatpush1.msra.mxu0 0.0
  %33 = vmatprep.subr.mxu0 0.0
  %34 = vmatpush1.msra.mxu0 0.0
  %35 = vmatprep.subr.mxu0 0.0
  %36 = vmatpush1.msra.mxu0 0.0
  %37 = vmatprep.subr.mxu0 0.0
  %38 = vmatpush1.msra.mxu0 0.0
  %39 = vmatprep.subr.mxu0 0.0
  %40 = vmatpush1.msra.mxu0 0.0
  %41 = vmatprep.subr.mxu0 0.0
  %42 = vmatpush1.msra.mxu0 0.0
  %43 = vmatprep.subr.mxu0 0.0
  %44 = vmatpush1.msra.mxu0 0.0
  %45 = vmatprep.subr.mxu0 0.0
  %46 = vmatpush1.msra.mxu0 0.0
  %47 = vmatprep.subr.mxu0 0.0
  %48 = vmatpush1.msra.mxu0 0.0
  %49 = vmatprep.subr.mxu0 0.0
  %50 = vmatpush1.msra.mxu0 0.0
  %51 = vmatprep.subr.mxu0 0.0
  %52 = vmatpush1.msra.mxu0 %v19
  %53 = vmatprep.subr.mxu0 0.0
  %54 = vmatpush1.msra.mxu0 %v18
  %55 = vmatprep.subr.mxu0 0.0
  %56 = vmatpush1.msra.mxu0 %v17
  %57 = vmatprep.subr.mxu0 0.0
  %58 = vmatpush1.msra.mxu0 %v16
  %59 = vmatprep.subr.mxu0 0.0
  %60 = vmatpush2.msra.mxu0 0.0
  %61 = vmatprep.subr.mxu0 0.0
  %62 = vmatpush2.msra.mxu0 0.0
  %63 = vmatprep.subr.mxu0 0.0
  %64 = vmatpush2.msra.mxu0 0.0
  %65 = vmatprep.subr.mxu0 0.0
  %66 = vmatpush2.msra.mxu0 0.0
  %67 = vmatprep.subr.mxu0 0.0
  %68 = vmatpush2.msra.mxu0 0.0
  %69 = vmatprep.subr.mxu0 0.0
  %70 = vmatpush2.msra.mxu0 0.0
  %71 = vmatprep.subr.mxu0 0.0
  %72 = vmatpush2.msra.mxu0 0.0
  %73 = vmatprep.subr.mxu0 0.0
  %74 = vmatpush2.msra.mxu0 0.0
  %75 = vmatprep.subr.mxu0 0.0
  %76 = vmatpush2.msra.mxu0 0.0
  %77 = vmatprep.subr.mxu0 0.0
  %78 = vmatpush2.msra.mxu0 0.0
  %79 = vmatprep.subr.mxu0 0.0
  %80 = vmatpush2.msra.mxu0 0.0
  %81 = vmatprep.subr.mxu0 0.0
  %82 = vmatpush2.msra.mxu0 0.0
  %83 = vmatprep.subr.mxu0 0.0
  %84 = vmatpush2.msra.mxu0 0.0
  %85 = vmatprep.subr.mxu0 0.0
  %86 = vmatpush2.msra.mxu0 0.0
  %87 = vmatprep.subr.mxu0 0.0
  %88 = vmatpush2.msra.mxu0 0.0
  %89 = vmatprep.subr.mxu0 0.0
  %90 = vmatpush2.msra.mxu0 0.0
  %91 = vmatprep.mubr.f32.mxu0 0.0
  %92 = vmatmul.mubr.f32.gmra.mxu0 %v22
  %v93 = vpop.f32.mrf.mxu0
  %v94 = vadd.f32 0.0, %v93
  %v95 = vpop.f32.mrf.mxu0
  %96 = vmatprep.mubr.f32.mxu0 0.0
  %97 = vmatmul.mubr.f32.gmra.mxu0 %v25
  %v98 = vpop.f32.mrf.mxu0
  %v99 = vadd.f32 0.0, %v98
  %v100 = vpop.f32.mrf.mxu0
  %101 = vdwg.mxu0
  %104 = vrot.lane.b32.xlu0 %v94, 112
  %v105 = vpop.permute.xlu0 %104
  %106 = vrot.lane.b32.xlu0 %v99, 112
  %v107 = vpop.permute.xlu0 %106
  %v110 = vmul.f32 %v94, %v105
  %v111 = vmul.f32 %v99, %v107
  %v112 = vld [vmem:[%s2] sm:$0xff]
  %v113 = vld [vmem:[%s2 + $0x8] sm:$0xff]
  %vm114 = vcmask 130048
  %v116 = vsel %vm114, %v110, 0
  %v119 = vsel %vm114, %v111, 0
  %121 = vmatprep.subr.mxu0 0.0
  %122 = vmatpush1.msra.mxu0 0.0
  %123 = vmatprep.subr.mxu0 0.0
  %124 = vmatpush1.msra.mxu0 0.0
  %125 = vmatprep.subr.mxu0 0.0
  %126 = vmatpush1.msra.mxu0 0.0
  %127 = vmatprep.subr.mxu0 0.0
  %128 = vmatpush1.msra.mxu0 0.0
  %129 = vmatprep.subr.mxu0 0.0
  %130 = vmatpush1.msra.mxu0 0.0
  %131 = vmatprep.subr.mxu0 0.0
  %132 = vmatpush1.msra.mxu0 0.0
  %133 = vmatprep.subr.mxu0 0.0
  %134 = vmatpush1.msra.mxu0 0.0
  %135 = vmatprep.subr.mxu0 0.0
  %136 = vmatpush1.msra.mxu0 0.0
  %137 = vmatprep.subr.mxu0 0.0
  %138 = vmatpush1.msra.mxu0 0.0
  %139 = vmatprep.subr.mxu0 0.0
  %140 = vmatpush1.msra.mxu0 0.0
  %141 = vmatprep.subr.mxu0 0.0
  %142 = vmatpush1.msra.mxu0 0.0
  %143 = vmatprep.subr.mxu0 0.0
  %144 = vmatpush1.msra.mxu0 0.0
  %145 = vmatprep.subr.mxu0 0.0
  %146 = vmatpush1.msra.mxu0 0.0
  %147 = vmatprep.subr.mxu0 0.0
  %148 = vmatpush1.msra.mxu0 0.0
  %149 = vmatprep.subr.mxu0 0.0
  %150 = vmatpush1.msra.mxu0 %v113
  %151 = vmatprep.subr.mxu0 0.0
  %152 = vmatpush1.msra.mxu0 %v112
  %153 = vmatprep.subr.mxu0 0.0
  %154 = vmatpush2.msra.mxu0 0.0
  %155 = vmatprep.subr.mxu0 0.0
  %156 = vmatpush2.msra.mxu0 0.0
  %157 = vmatprep.subr.mxu0 0.0
  %158 = vmatpush2.msra.mxu0 0.0
  %159 = vmatprep.subr.mxu0 0.0
  %160 = vmatpush2.msra.mxu0 0.0
  %161 = vmatprep.subr.mxu0 0.0
  %162 = vmatpush2.msra.mxu0 0.0
  %163 = vmatprep.subr.mxu0 0.0
  %164 = vmatpush2.msra.mxu0 0.0
  %165 = vmatprep.subr.mxu0 0.0
  %166 = vmatpush2.msra.mxu0 0.0
  %167 = vmatprep.subr.mxu0 0.0
  %168 = vmatpush2.msra.mxu0 0.0
  %169 = vmatprep.subr.mxu0 0.0
  %170 = vmatpush2.msra.mxu0 0.0
  %171 = vmatprep.subr.mxu0 0.0
  %172 = vmatpush2.msra.mxu0 0.0
  %173 = vmatprep.subr.mxu0 0.0
  %174 = vmatpush2.msra.mxu0 0.0
  %175 = vmatprep.subr.mxu0 0.0
  %176 = vmatpush2.msra.mxu0 0.0
  %177 = vmatprep.subr.mxu0 0.0
  %178 = vmatpush2.msra.mxu0 0.0
  %179 = vmatprep.subr.mxu0 0.0
  %180 = vmatpush2.msra.mxu0 0.0
  %181 = vmatprep.subr.mxu0 0.0
  %182 = vmatpush2.msra.mxu0 0.0
  %183 = vmatprep.subr.mxu0 0.0
  %184 = vmatpush2.msra.mxu0 0.0
  %185 = vmatprep.mubr.f32.mxu0 0.0
  %186 = vmatmul.mubr.f32.gmra.mxu0 %v116
  %v187 = vpop.f32.mrf.mxu0
  %v188 = vadd.f32 0.0, %v187
  %v189 = vpop.f32.mrf.mxu0
  %190 = vmatprep.mubr.f32.mxu0 0.0
  %191 = vmatmul.mubr.f32.gmra.mxu0 %v119
  %v192 = vpop.f32.mrf.mxu0
  %v193 = vadd.f32 0.0, %v192
  %v194 = vpop.f32.mrf.mxu0
  %195 = vdwg.mxu0
  %196 = vst [vmem:[%s3] sm:$0xff] %v188
  %197 = vst [vmem:[%s3 + $0x8] sm:$0xff] %v193
  // Predicated region
  $region14: #{dylr_forward.1} parent=0 // pred_check
    _
  $region15: #{dylr_forward.1} parent=0 // pred_check_branch
    %199 = sbr.rel (0) target = $region17
  $region16: #{dylr_forward.1} parent=0 // pred_region
    _
  $region17: #{dylr_forward.1} parent=0 // pred_fallthru
    _
  // Predicated region
  $region18: #{dylr_forward.1} parent=0 // pred_check
    _
  $region19: #{dylr_forward.1} parent=0 // pred_check_branch
    %201 = sbr.rel (0) target = $region21
  $region20: #{dylr_forward.1} parent=0 // pred_region
    _
  $region21: #{dylr_forward.1} parent=0 // pred_fallthru
    _

</llo_original>
